<compile_context>
chip_gen: v7x
topology: tpu7x:2x2x1
jax: 0.10.0
libtpu: 0.0.40
codegen_flags: <defaults>
</compile_context>

<pallas_src>
import functools

import jax
import jax.numpy as jnp
from jax.experimental import pallas as pl
from jax.experimental.pallas import tpu as pltpu

HIDDEN = 68        # fixed by the module definition
HIDDEN_PAD = 128   # lane-aligned hidden padding (extra columns/rows are zeros)
W2_ROWS = 8        # sublane-aligned padding for the tiny second-layer weight


def _round_up(x, m):
    return ((x + m - 1) // m) * m


def _cdiv(a, b):
    return (a + b - 1) // b


def _choose_block_rows(bk, d, *, target_bytes=1 << 20, max_rows=4096, override=None):
    """Batch-tile rows: multiple of 128, sized from D, >=2 grid steps when possible."""
    if override is not None:
        tb = max(128, (int(override) // 128) * 128)
    else:
        tb = max(128, min(max_rows, ((target_bytes // (4 * d)) // 128) * 128))
    b_floor = (bk // 128) * 128          # bk >= 128 is guaranteed by the wrapper
    cap = b_floor
    if b_floor >= 256:                   # leave >= 2 grid steps for v7x's two TCs
        cap = min(cap, _round_up(_cdiv(bk, 2), 128))
    return min(tb, cap)


def mlp_kernel(x_ref, w1_ref, b1_ref, w2_ref, b2_ref, o_ref):
    # Layer 1: (tb, D) @ (D, 128) on the MXU with f32 accumulation, then a
    # full-lane-width VPU bias add + ReLU on the (tb, 128) tile.
    h = jnp.dot(x_ref[...], w1_ref[...], preferred_element_type=jnp.float32)
    h = jnp.maximum(h + b1_ref[...], 0.0)
    # Layer 2 (68 -> 1, hidden zero-padded to 128), emitted lane-dense:
    # transpose h on the otherwise-idle XLU and contract with the zero-padded
    # (8, 128) weight rows on the otherwise-idle MXU; row 0 holds the result.
    o8 = jnp.dot(w2_ref[...], h.T, preferred_element_type=jnp.float32)   # (8, tb)
    o = o8[0:1, :] + b2_ref[0]                                           # (1, tb)
    o_ref[...] = o.reshape(o_ref.shape).astype(o_ref.dtype)


def pad_params(w1, b1, w2, b2):
    """One-time layout plumbing (hoisted out of the per-call forward).

    w1: (D, 68); b1: (1, 68) or (68,); w2: (68, 1) or (68,); b2: scalar-like.
    Zero-padding the hidden dim keeps the math bit-identical.
    """
    d, h = w1.shape
    assert h == HIDDEN
    w1p = jnp.zeros((d, HIDDEN_PAD), jnp.float32).at[:, :h].set(
        jnp.asarray(w1, jnp.float32))
    b1p = jnp.zeros((1, HIDDEN_PAD), jnp.float32).at[:, :h].set(
        jnp.asarray(b1, jnp.float32).reshape(1, h))
    w2p = jnp.zeros((W2_ROWS, HIDDEN_PAD), jnp.float32).at[0, :h].set(
        jnp.asarray(w2, jnp.float32).reshape(h))
    b2s = jnp.asarray(b2, jnp.float32).reshape((1,))
    return w1p, b1p, w2p, b2s


@functools.partial(jax.jit, static_argnames=("block_rows",))
def neural_net_forward(x, w1p, b1p, w2p, b2s, *, block_rows=None):
    """x: (B, D) f32; padded params from `pad_params`. Returns (B,) f32."""
    x = x.astype(jnp.float32)
    b, d = x.shape

    # Tiny-batch path only: pad up to one aligned 128-row tile (cheap, B < 128).
    # For B >= 128, x is streamed unpadded; a ragged last tile is handled by the
    # pipeline's bounds-clamped DMA and its garbage rows are discarded below.
    bk = b
    if b < 128:
        bk = 128
        x = jnp.pad(x, ((0, bk - b), (0, 0)))

    tb = _choose_block_rows(bk, d, override=block_rows)
    nb = _cdiv(bk, tb)

    # Rough per-core VMEM need: double-buffered x + (budgeted double) weights +
    # the h / h^T intermediates + the double-buffered lane-dense output block.
    vmem_est = (2 * tb * d * 4 + 2 * d * HIDDEN_PAD * 4
                + 2 * tb * HIDDEN_PAD * 4 + 2 * tb * 4 + (1 << 16))
    vmem_limit = int(max(32 << 20, min(56 << 20, 2 * vmem_est)))

    cost = pl.CostEstimate(
        flops=2 * bk * HIDDEN * (d + 2),
        transcendentals=0,
        bytes_accessed=4 * (bk * d + d * HIDDEN + 2 * HIDDEN + bk + 1),
    )

    out = pl.pallas_call(
        mlp_kernel,
        out_shape=jax.ShapeDtypeStruct((nb, 1, tb), jnp.float32),
        grid=(nb,),
        in_specs=[
            # x: streamed per batch tile (double-buffered by the pipeline).
            pl.BlockSpec((tb, d), lambda i: (i, 0)),
            # Weights / biases: constant block index -> VMEM-resident.
            pl.BlockSpec((d, HIDDEN_PAD), lambda i: (0, 0)),
            pl.BlockSpec((1, HIDDEN_PAD), lambda i: (0, 0)),
            pl.BlockSpec((W2_ROWS, HIDDEN_PAD), lambda i: (0, 0)),
            # b2: scalar in SMEM (avoids a padded VMEM vreg tile).
            pl.BlockSpec(memory_space=pltpu.MemorySpace.SMEM),
        ],
        # Lane-dense (1, 1, tb) output rows -> contiguous writeback DMA.
        out_specs=pl.BlockSpec((1, 1, tb), lambda i: (i, 0, 0)),
        compiler_params=pltpu.CompilerParams(
            dimension_semantics=("parallel",),
            vmem_limit_bytes=vmem_limit,
        ),
        cost_estimate=cost,
    )(x, w1p, b1p, w2p, b2s)

    return out.reshape(-1)[:b]   # drop tail padding + squeeze(1)


def init_params(key, input_dim):
    """Deterministic synthetic parameter init (PyTorch-Linear-like uniform)."""
    k1, k2, k3, k4 = jax.random.split(key, 4)
    bound1 = 1.0 / jnp.sqrt(input_dim)
    bound2 = 1.0 / jnp.sqrt(HIDDEN)
    # Stored already transposed relative to torch's (out_features, in_features).
    w1 = jax.random.uniform(k1, (input_dim, HIDDEN), jnp.float32, -bound1, bound1)
    b1 = jax.random.uniform(k2, (1, HIDDEN), jnp.float32, -bound1, bound1)
    w2 = jax.random.uniform(k3, (HIDDEN, 1), jnp.float32, -bound2, bound2)
    b2 = jax.random.uniform(k4, (1, 1), jnp.float32, -bound2, bound2)
    return w1, b1, w2, b2


if __name__ == "__main__":
    key = jax.random.PRNGKey(0)
    kp, kx1, kx2 = jax.random.split(key, 3)

    input_dim = 93   # COVID-19 dataset feature width
    w1, b1, w2, b2 = init_params(kp, input_dim)
    params = pad_params(w1, b1, w2, b2)   # one-time padding, reused across calls

    def ref_forward(x):
        h = jnp.maximum(
            jnp.dot(x, w1, precision=jax.lax.Precision.HIGHEST) + b1, 0.0)
        return (jnp.dot(h, w2, precision=jax.lax.Precision.HIGHEST) + b2)[:, 0]

    # Case 1: batch that tiles exactly (2 grid steps -> exercises the pipeline
    # and the v7x two-TensorCore split of the "parallel" batch axis).
    x1 = jax.random.normal(kx1, (256, input_dim), jnp.float32)
    y1 = jax.block_until_ready(neural_net_forward(x1, *params))
    assert y1.shape == (256,)
    assert jnp.allclose(y1, ref_forward(x1), atol=2e-5, rtol=2e-5)

    # Case 2: ragged batch -> copy-free partial last tile; garbage rows dropped.
    x2 = jax.random.normal(kx2, (200, input_dim), jnp.float32)
    y2 = jax.block_until_ready(neural_net_forward(x2, *params))
    assert y2.shape == (200,)
    assert jnp.allclose(y2, ref_forward(x2), atol=2e-5, rtol=2e-5)

    # TODO(synk): cal_loss (RMSE via nn.MSELoss) is training-time glue, not part
    # of forward(); left to plain JAX if needed.
    print("KERNEL_OK")
</pallas_src>

<mosaic_0001>
module attributes {stable_mosaic.version = 11 : i64} {
  func.func @mlp_kernel(%arg0: i32, %arg1: memref<128x93xf32, #tpu.memory_space<vmem>>, %arg2: memref<93x128xf32, #tpu.memory_space<vmem>>, %arg3: memref<1x128xf32, #tpu.memory_space<vmem>>, %arg4: memref<8x128xf32, #tpu.memory_space<vmem>>, %arg5: memref<1xf32, #tpu.memory_space<smem>>, %arg6: memref<1x1x128xf32, #tpu.memory_space<vmem>>) attributes {dimension_semantics = [#tpu.dimension_semantics<parallel>], iteration_bounds = array<i64: 2>, scalar_prefetch = 0 : i64, scratch_operands = 0 : i64, tpu.core_type = #tpu.core_type<tc>, window_params = [{transform_indices = @transform_0, window_bounds = array<i64: 128, 93>}, {pipeline_mode = #tpu.pipeline_mode<synchronous>, transform_indices = @transform_1, window_bounds = array<i64: 93, 128>}, {pipeline_mode = #tpu.pipeline_mode<synchronous>, transform_indices = @transform_2, window_bounds = array<i64: 1, 128>}, {pipeline_mode = #tpu.pipeline_mode<synchronous>, transform_indices = @transform_3, window_bounds = array<i64: 8, 128>}, {transform_indices = @transform_4, window_bounds = array<i64: 1>}, {transform_indices = @transform_5, window_bounds = array<i64: 1, 1, 128>}]} {
    %c0 = arith.constant 0 : index
    %c0_0 = arith.constant 0 : index
    %0 = vector.load %arg1[%c0, %c0_0] : memref<128x93xf32, #tpu.memory_space<vmem>>, vector<128x93xf32>
    %c0_1 = arith.constant 0 : index
    %c0_2 = arith.constant 0 : index
    %1 = vector.load %arg2[%c0_1, %c0_2] : memref<93x128xf32, #tpu.memory_space<vmem>>, vector<93x128xf32>
    %cst = arith.constant dense<0.000000e+00> : vector<128x128xf32>
    %2 = tpu.matmul %0, %1, %cst {dimension_numbers = #tpu.dot_dimension_numbers<[1], [0], [0], [1], [0, 0, 1, 1], [], []>} : vector<128x93xf32>, vector<93x128xf32>, vector<128x128xf32> -> vector<128x128xf32>
    %c0_3 = arith.constant 0 : index
    %c0_4 = arith.constant 0 : index
    %3 = vector.load %arg3[%c0_3, %c0_4] : memref<1x128xf32, #tpu.memory_space<vmem>>, vector<1x128xf32>
    %4 = vector.broadcast %3 : vector<1x128xf32> to vector<128x128xf32>
    %5 = arith.addf %2, %4 : vector<128x128xf32>
    %cst_5 = arith.constant 0.000000e+00 : f32
    %6 = vector.broadcast %cst_5 : f32 to vector<128x128xf32>
    %7 = arith.maximumf %5, %6 : vector<128x128xf32>
    %c0_6 = arith.constant 0 : index
    %c0_7 = arith.constant 0 : index
    %8 = vector.load %arg4[%c0_6, %c0_7] : memref<8x128xf32, #tpu.memory_space<vmem>>, vector<8x128xf32>
    %9 = tpu.transpose %7, [1, 0] : vector<128x128xf32> -> vector<128x128xf32>
    %cst_8 = arith.constant dense<0.000000e+00> : vector<8x128xf32>
    %10 = tpu.matmul %8, %9, %cst_8 {dimension_numbers = #tpu.dot_dimension_numbers<[1], [0], [0], [1], [0, 0, 1, 1], [], []>} : vector<8x128xf32>, vector<128x128xf32>, vector<8x128xf32> -> vector<8x128xf32>
    %11 = vector.extract_strided_slice %10 {offsets = [0, 0], sizes = [1, 128], strides = [1, 1]} : vector<8x128xf32> to vector<1x128xf32>
    %c0_9 = arith.constant 0 : index
    %12 = memref.load %arg5[%c0_9] : memref<1xf32, #tpu.memory_space<smem>>
    %13 = vector.broadcast %12 : f32 to vector<1x128xf32>
    %14 = arith.addf %11, %13 : vector<1x128xf32>
    %15 = vector.shape_cast %14 : vector<1x128xf32> to vector<1x1x128xf32>
    %c0_10 = arith.constant 0 : index
    %c0_11 = arith.constant 0 : index
    %c0_12 = arith.constant 0 : index
    %16 = vector.load %arg6[%c0_10, %c0_11, %c0_12] : memref<1x1x128xf32, #tpu.memory_space<vmem>>, vector<1x1x128xf32>
    tpu.vector_store %arg6[%c0_10, %c0_11, %c0_12], %15 {strides = array<i32>} : memref<1x1x128xf32, #tpu.memory_space<vmem>>, vector<1x1x128xf32>,
    return
  }
  func.func @transform_0(%arg0: i32) -> (i32, i32) {
    %c0_i32 = arith.constant 0 : i32
    %c0_i32_0 = arith.constant 0 : i32
    return %arg0, %c0_i32 : i32, i32
  }
  func.func @transform_1(%arg0: i32) -> (i32, i32) {
    %c0_i32 = arith.constant 0 : i32
    %c0_i32_0 = arith.constant 0 : i32
    %c0_i32_1 = arith.constant 0 : i32
    return %c0_i32, %c0_i32_0 : i32, i32
  }
  func.func @transform_2(%arg0: i32) -> (i32, i32) {
    %c0_i32 = arith.constant 0 : i32
    %c0_i32_0 = arith.constant 0 : i32
    %c0_i32_1 = arith.constant 0 : i32
    return %c0_i32, %c0_i32_0 : i32, i32
  }
  func.func @transform_3(%arg0: i32) -> (i32, i32) {
    %c0_i32 = arith.constant 0 : i32
    %c0_i32_0 = arith.constant 0 : i32
    %c0_i32_1 = arith.constant 0 : i32
    return %c0_i32, %c0_i32_0 : i32, i32
  }
  func.func @transform_4(%arg0: i32) -> i32 {
    %c0_i32 = arith.constant 0 : i32
    %c0_i32_0 = arith.constant 0 : i32
    return %c0_i32 : i32
  }
  func.func @transform_5(%arg0: i32) -> (i32, i32, i32) {
    %c0_i32 = arith.constant 0 : i32
    %c0_i32_0 = arith.constant 0 : i32
    %c0_i32_1 = arith.constant 0 : i32
    return %arg0, %c0_i32, %c0_i32_0 : i32, i32, i32
  }
}

</mosaic_0001>

<llo_original>
// kernel: neural_net_forward.1
$region0: #{neural_net_forward.1}
  #allocation0 [shape = 'u32[]', space=smem, size = 0x4, offset = 0x4, fixed_abs, tag = 'smem constant byte address 0x4 - core index']
  #allocation1 [shape = 'u32[144,128]{1,0:T(1,128)}', space=vmem, size = 0x12000, scoped, tag = 'internal scratch']
  #allocation2 [shape = 'f32[1]{0:T(128)S(6)}', space=smem, size = 0x200, scoped, tag = 'scoped memory for neural_net_forward.1']
  %s0 = inlined_call_operand.vmem [shape: f32[256,93], index: 0, kind: input, shape index: {}]
  %s1 = inlined_call_operand.vmem [shape: f32[93,128], index: 1, kind: input, shape index: {}]
  %s2 = inlined_call_operand.vmem [shape: f32[1,128], index: 2, kind: input, shape index: {}]
  %s3 = inlined_call_operand.vmem [shape: f32[8,128], index: 3, kind: input, shape index: {}]
  %s4 = inlined_call_operand.<no memory space> [shape: f32[1], index: 4, kind: input, shape index: {}]
  %s5 = inlined_call_operand.hbm [shape: f32[2,1,128], index: 5, kind: output, shape index: {}]
  %s6 = sld [smem:[#allocation0]]
  $region53: #{neural_net_forward.1} parent=0
    _
  %s8 = ssub.s32 1, %s6
  %s9 = scalar_select 0, %s8, %s6
  %10 = sst [smem:[#allocation2]] %s4
  $region1: #{neural_net_forward.1} parent=0
    #allocation3 [shape = 'u8[1024]{0}', space=vmem, size = 0x400, scoped, tag = 'output window, operand 0']
    #allocation4 [shape = 's32[2]{0}', space=sflag, size = 0x8, scoped, tag = 'scoped memory for neural_net_forward.1']
    %11 = vsyncpa [#allocation4], 0
    %s12 = scalar_lea.sflag [#allocation4], 1
    %13 = vsyncpa %s12, 0
    loop: start=0, step=1, limit=4
    $region2: #{neural_net_forward.1} parent=1 // loop_pre_header
      _
    $region3: #{neural_net_forward.1} parent=1 // loop_header
      %s15 = sphi 0, %s19
      %p16 = scmp.ge.s32.totalorder %s15, 4
      %s25 = sphi 0, %s27
      %s28 = sphi 0, %s25
      %s29 = sphi 0, %s28
      %s45 = sphi 0, %s29
      %s49 = sphi 0, %s49
      %s51 = sphi 0, %s49
      %s52 = sphi 0, %s51
      %s66 = sphi 0, %s52
      %s70 = sphi 0, %s70
      %s72 = sphi 0, %s70
      %s73 = sphi 0, %s72
      %s87 = sphi 0, %s73
      %s91 = sphi 0, %s91
      %s93 = sphi 0, %s91
      %s94 = sphi 0, %s93
      %s108 = sphi 0, %s94
      %s112 = sphi 0, %s112
      %s114 = sphi 0, %s112
      %s115 = sphi 0, %s114
      %s129 = sphi 0, %s115
      %s135 = sphi 0, %s137
      %s138 = sphi 0, %s135
      %s139 = sphi 0, %s138
      %s155 = sphi 0, %s139
    $region4: #{neural_net_forward.1} parent=1 // loop_header_branch
      %18 = sbr.rel (%p16) target = $region8
    $region5: #{neural_net_forward.1} parent=1 // loop_body
      %s20 = ssub.s32 %s15, 1
      %s21 = ssub.s32 %s15, 2
      %s22 = sadd.s32 %s15, 1
      %s23 = ssub.s32 %s15, %s22
      %p24 = scmp.eq.s32.totalorder %s23, 0
      %s26 = sadd.s32 %s25, 1
      %s27 = scalar_select %p24, %s25, %s26
      %p30 = pneg %p24
      %p31 = scmp.eq.s32.totalorder %s15, 1
      %p32 = por %p30, %p31
      %p33 = scmp.ne.s32.totalorder %s25, %s28
      %p34 = scmp.eq.s32.totalorder %s15, 0
      %p35 = por %p33, %p34
      %p36 = scmp.ne.s32.totalorder %s25, %s28
      %p37 = scmp.eq.s32.totalorder %s20, 1
      %p38 = por %p36, %p37
      %p39 = scmp.ne.s32.totalorder %s28, %s29
      %p40 = scmp.eq.s32.totalorder %s20, 0
      %p41 = por %p39, %p40
      %p42 = scmp.ne.s32.totalorder %s28, %s29
      %p43 = scmp.eq.s32.totalorder %s21, 1
      %p44 = por %p42, %p43
      %p46 = scmp.ne.s32.totalorder %s29, %s45
      %p47 = scmp.eq.s32.totalorder %s21, 0
      %p48 = por %p46, %p47
      %s50 = sadd.s32 %s49, 1
      %p53 = scmp.eq.s32.totalorder %s15, 1
      %p54 = scmp.ne.s32.totalorder %s49, %s51
      %p55 = scmp.eq.s32.totalorder %s15, 0
      %p56 = por %p54, %p55
      %p57 = scmp.ne.s32.totalorder %s49, %s51
      %p58 = scmp.eq.s32.totalorder %s20, 1
      %p59 = por %p57, %p58
      %p60 = scmp.ne.s32.totalorder %s51, %s52
      %p61 = scmp.eq.s32.totalorder %s20, 0
      %p62 = por %p60, %p61
      %p63 = scmp.ne.s32.totalorder %s51, %s52
      %p64 = scmp.eq.s32.totalorder %s21, 1
      %p65 = por %p63, %p64
      %p67 = scmp.ne.s32.totalorder %s52, %s66
      %p68 = scmp.eq.s32.totalorder %s21, 0
      %p69 = por %p67, %p68
      %s71 = sadd.s32 %s70, 1
      %p74 = scmp.eq.s32.totalorder %s15, 1
      %p75 = scmp.ne.s32.totalorder %s70, %s72
      %p76 = scmp.eq.s32.totalorder %s15, 0
      %p77 = por %p75, %p76
      %p78 = scmp.ne.s32.totalorder %s70, %s72
      %p79 = scmp.eq.s32.totalorder %s20, 1
      %p80 = por %p78, %p79
      %p81 = scmp.ne.s32.totalorder %s72, %s73
      %p82 = scmp.eq.s32.totalorder %s20, 0
      %p83 = por %p81, %p82
      %p84 = scmp.ne.s32.totalorder %s72, %s73
      %p85 = scmp.eq.s32.totalorder %s21, 1
      %p86 = por %p84, %p85
      %p88 = scmp.ne.s32.totalorder %s73, %s87
      %p89 = scmp.eq.s32.totalorder %s21, 0
      %p90 = por %p88, %p89
      %s92 = sadd.s32 %s91, 1
      %p95 = scmp.eq.s32.totalorder %s15, 1
      %p96 = scmp.ne.s32.totalorder %s91, %s93
      %p97 = scmp.eq.s32.totalorder %s15, 0
      %p98 = por %p96, %p97
      %p99 = scmp.ne.s32.totalorder %s91, %s93
      %p100 = scmp.eq.s32.totalorder %s20, 1
      %p101 = por %p99, %p100
      %p102 = scmp.ne.s32.totalorder %s93, %s94
      %p103 = scmp.eq.s32.totalorder %s20, 0
      %p104 = por %p102, %p103
      %p105 = scmp.ne.s32.totalorder %s93, %s94
      %p106 = scmp.eq.s32.totalorder %s21, 1
      %p107 = por %p105, %p106
      %p109 = scmp.ne.s32.totalorder %s94, %s108
      %p110 = scmp.eq.s32.totalorder %s21, 0
      %p111 = por %p109, %p110
      %s113 = sadd.s32 %s112, 1
      %p116 = scmp.eq.s32.totalorder %s15, 1
      %p117 = scmp.ne.s32.totalorder %s112, %s114
      %p118 = scmp.eq.s32.totalorder %s15, 0
      %p119 = por %p117, %p118
      %p120 = scmp.ne.s32.totalorder %s112, %s114
      %p121 = scmp.eq.s32.totalorder %s20, 1
      %p122 = por %p120, %p121
      %p123 = scmp.ne.s32.totalorder %s114, %s115
      %p124 = scmp.eq.s32.totalorder %s20, 0
      %p125 = por %p123, %p124
      %p126 = scmp.ne.s32.totalorder %s114, %s115
      %p127 = scmp.eq.s32.totalorder %s21, 1
      %p128 = por %p126, %p127
      %p130 = scmp.ne.s32.totalorder %s115, %s129
      %p131 = scmp.eq.s32.totalorder %s21, 0
      %p132 = por %p130, %p131
      %s133 = ssub.s32 %s15, %s22
      %p134 = scmp.eq.s32.totalorder %s133, 0
      %s136 = sadd.s32 %s135, 1
      %s137 = scalar_select %p134, %s135, %s136
      %p140 = pneg %p134
      %p141 = scmp.eq.s32.totalorder %s15, 1
      %p142 = por %p140, %p141
      %p143 = scmp.ne.s32.totalorder %s135, %s138
      %p144 = scmp.eq.s32.totalorder %s15, 0
      %p145 = por %p143, %p144
      %p146 = scmp.ne.s32.totalorder %s135, %s138
      %p147 = scmp.eq.s32.totalorder %s20, 1
      %p148 = por %p146, %p147
      %p149 = scmp.ne.s32.totalorder %s138, %s139
      %p150 = scmp.eq.s32.totalorder %s20, 0
      %p151 = por %p149, %p150
      %p152 = scmp.ne.s32.totalorder %s138, %s139
      %p153 = scmp.eq.s32.totalorder %s21, 1
      %p154 = por %p152, %p153
      %p156 = scmp.ne.s32.totalorder %s139, %s155
      %p157 = scmp.eq.s32.totalorder %s21, 0
      %p158 = por %p156, %p157
      %p159 = scmp.le.s32.totalorder 1, %s15
      %p160 = scmp.lt.s32.totalorder %s15, 3
      %p161 = pnand %p159, %p160
      %p162 = pneg %p161
      // Predicated region
      $region9: #{neural_net_forward.1} parent=5 // pred_check
        _
      $region10: #{neural_net_forward.1} parent=5 // pred_check_branch
        %164 = sbr.rel (%p161) target = $region12
      $region11: #{neural_net_forward.1} parent=5 // pred_region
        %s165 = ssub.s32 %s15, 1
        // Predicated region
        $region13: #{neural_net_forward.1} parent=11 // pred_check
          %p166 = pneg %p62
        $region14: #{neural_net_forward.1} parent=11 // pred_check_branch
          %168 = sbr.rel (%p166) target = $region16
        $region15: #{neural_net_forward.1} parent=11 // pred_region
          _
        $region16: #{neural_net_forward.1} parent=11 // pred_fallthru
          _
        // Predicated region
        $region17: #{neural_net_forward.1} parent=11 // pred_check
          %p169 = pneg %p83
        $region18: #{neural_net_forward.1} parent=11 // pred_check_branch
          %171 = sbr.rel (%p169) target = $region20
        $region19: #{neural_net_forward.1} parent=11 // pred_region
          _
        $region20: #{neural_net_forward.1} parent=11 // pred_fallthru
          _
        // Predicated region
        $region21: #{neural_net_forward.1} parent=11 // pred_check
          %p172 = pneg %p104
        $region22: #{neural_net_forward.1} parent=11 // pred_check_branch
          %174 = sbr.rel (%p172) target = $region24
        $region23: #{neural_net_forward.1} parent=11 // pred_region
          _
        $region24: #{neural_net_forward.1} parent=11 // pred_fallthru
          _
        // Predicated region
        $region25: #{neural_net_forward.1} parent=11 // pred_check
          %p175 = pneg %p125
        $region26: #{neural_net_forward.1} parent=11 // pred_check_branch
          %177 = sbr.rel (%p175) target = $region28
        $region27: #{neural_net_forward.1} parent=11 // pred_region
          _
        $region28: #{neural_net_forward.1} parent=11 // pred_fallthru
          _
      $region12: #{neural_net_forward.1} parent=5 // pred_fallthru
        _
      %p178 = scmp.lt.s32.totalorder %s15, 2
      // Predicated region
      $region29: #{neural_net_forward.1} parent=5 // pred_check
        %p179 = pneg %p178
      $region30: #{neural_net_forward.1} parent=5 // pred_check_branch
        %181 = sbr.rel (%p179) target = $region32
      $region31: #{neural_net_forward.1} parent=5 // pred_region
        // Predicated region
        $region33: #{neural_net_forward.1} parent=31 // pred_check
          %p182 = pneg %p35
        $region34: #{neural_net_forward.1} parent=31 // pred_check_branch
          %184 = sbr.rel (%p182) target = $region36
        $region35: #{neural_net_forward.1} parent=31 // pred_region
          %s185 = smul.u32 16, %s15
          %p186 = scmp.lt.s32.totalorder %s185, 31
          %s187 = scalar_select %p186, %s185, 31
          %s188 = smul.addr %s187, 8
          %s189 = scalar_lea.vmem %s0, %s188
          %s190 = smul.u32 16, %s15
        $region36: #{neural_net_forward.1} parent=31 // pred_fallthru
          _
      $region32: #{neural_net_forward.1} parent=5 // pred_fallthru
        _
      %p191 = scmp.le.s32.totalorder 1, %s15
      %p192 = scmp.lt.s32.totalorder %s15, 3
      %p193 = pnand %p191, %p192
      %p194 = pneg %p193
      // Predicated region
      $region37: #{neural_net_forward.1} parent=5 // pred_check
        _
      $region38: #{neural_net_forward.1} parent=5 // pred_check_branch
        %196 = sbr.rel (%p193) target = $region40
      $region39: #{neural_net_forward.1} parent=5 // pred_region
        %s197 = ssub.s32 %s15, 1
        %s198 = smul.u32 16, %s20
        %p199 = scmp.lt.s32.totalorder %s198, 31
        %s200 = scalar_select %p199, %s198, 31
        %s201 = smul.addr %s200, 8
        %s202 = scalar_lea.vmem %s0, %s201
        %p203 = pneg %p41
        %p204 = pneg %p38
        %p205 = pneg %p62
        %p206 = pneg %p59
        %p207 = pneg %p83
        %p208 = pneg %p80
        %p209 = pneg %p104
        %p210 = pneg %p101
        %p211 = pneg %p125
        %p212 = pneg %p122
        %p213 = pneg %p151
        %p214 = pneg %p148
        %s215 = sand.u32 %s138, 1
        %s216 = scalar_lea.sflag [#allocation4], %s215
        %s217 = sand.u32 %s138, 1
        %s218 = scalar_lea.vmem [#allocation3], %s217
        %s219 = smul.u32 16, %s20
        %p220 = scmp.lt.s32.totalorder %s219, 31
        %s221 = scalar_select %p220, %s219, 31
        %s222 = smul.addr %s221, 8
        %s223 = scalar_lea.vmem %s0, %s222
        %s224 = smul.u32 16, %s20
        %v225 = vld [vmem:[%s223] sm:$0xff]
        %v226 = vld [vmem:[%s223 + $0x8] sm:$0xff]
        %v227 = vld [vmem:[%s223 + $0x10] sm:$0xff]
        %v228 = vld [vmem:[%s223 + $0x18] sm:$0xff]
        %v229 = vld [vmem:[%s223 + $0x20] sm:$0xff]
        %v230 = vld [vmem:[%s223 + $0x28] sm:$0xff]
        %v231 = vld [vmem:[%s223 + $0x30] sm:$0xff]
        %v232 = vld [vmem:[%s223 + $0x38] sm:$0xff]
        %v233 = vld [vmem:[%s223 + $0x40] sm:$0xff]
        %v234 = vld [vmem:[%s223 + $0x48] sm:$0xff]
        %v235 = vld [vmem:[%s223 + $0x50] sm:$0xff]
        %v236 = vld [vmem:[%s223 + $0x58] sm:$0xff]
        %v237 = vld [vmem:[%s223 + $0x60] sm:$0xff]
        %v238 = vld [vmem:[%s223 + $0x68] sm:$0xff]
        %v239 = vld [vmem:[%s223 + $0x70] sm:$0xff]
        %v240 = vld [vmem:[%s223 + $0x78] sm:$0xff]
        %v241 = vld [vmem:[%s1] sm:$0xff]
        %v242 = vld [vmem:[%s1 + $0x8] sm:$0xff]
        %v243 = vld [vmem:[%s1 + $0x10] sm:$0xff]
        %v244 = vld [vmem:[%s1 + $0x18] sm:$0xff]
        %v245 = vld [vmem:[%s1 + $0x20] sm:$0xff]
        %v246 = vld [vmem:[%s1 + $0x28] sm:$0xff]
        %v247 = vld [vmem:[%s1 + $0x30] sm:$0xff]
        %v248 = vld [vmem:[%s1 + $0x38] sm:$0xff]
        %v249 = vld [vmem:[%s1 + $0x40] sm:$0xff]
        %v250 = vld [vmem:[%s1 + $0x48] sm:$0xff]
        %v251 = vld [vmem:[%s1 + $0x50] sm:$0xff]
        %v252 = vld [vmem:[%s1 + $0x58] sm:$0x1f]
        %v253 = vld [vmem:[%s2] sm:$0x1]
        %v255 = vlaneseq
        %v256 = vshrl.u32 %v255, 7
        %v257 = vsub.s32 0, %v256
        %v258 = vrot.slane %v253, %v257
        %vm260 = vcmask 760832
        %v262 = vsel %vm260, %v225, 0
        %v265 = vsel %vm260, %v226, 0
        %v268 = vsel %vm260, %v227, 0
        %v271 = vsel %vm260, %v228, 0
        %v274 = vsel %vm260, %v229, 0
        %v277 = vsel %vm260, %v230, 0
        %v280 = vsel %vm260, %v231, 0
        %v283 = vsel %vm260, %v232, 0
        %v286 = vsel %vm260, %v233, 0
        %v289 = vsel %vm260, %v234, 0
        %v292 = vsel %vm260, %v235, 0
        %v295 = vsel %vm260, %v236, 0
        %v298 = vsel %vm260, %v237, 0
        %v301 = vsel %vm260, %v238, 0
        %v304 = vsel %vm260, %v239, 0
        %v307 = vsel %vm260, %v240, 0
        %vm309 = vcmask 1044480
        %v311 = vsel %vm309, %v252, 0
        %313 = vmatprep.subr.mxu0 0.0
        %314 = vmatpush1.msra.mxu0 %v241
        %315 = vmatprep.subr.mxu0 0.0
        %316 = vmatpush1.msra.mxu0 %v242
        %317 = vmatprep.subr.mxu0 0.0
        %318 = vmatpush1.msra.mxu0 %v243
        %319 = vmatprep.subr.mxu0 0.0
        %320 = vmatpush1.msra.mxu0 %v244
        %321 = vmatprep.subr.mxu0 0.0
        %322 = vmatpush1.msra.mxu0 %v245
        %323 = vmatprep.subr.mxu0 0.0
        %324 = vmatpush1.msra.mxu0 %v246
        %325 = vmatprep.subr.mxu0 0.0
        %326 = vmatpush1.msra.mxu0 %v247
        %327 = vmatprep.subr.mxu0 0.0
        %328 = vmatpush1.msra.mxu0 %v248
        %329 = vmatprep.subr.mxu0 0.0
        %330 = vmatpush1.msra.mxu0 %v249
        %331 = vmatprep.subr.mxu0 0.0
        %332 = vmatpush1.msra.mxu0 %v250
        %333 = vmatprep.subr.mxu0 0.0
        %334 = vmatpush1.msra.mxu0 %v251
        %335 = vmatprep.subr.mxu0 0.0
        %336 = vmatpush1.msra.mxu0 %v311
        %337 = vmatprep.subr.mxu0 0.0
        %338 = vmatpush1.msra.mxu0 0.0
        %339 = vmatprep.subr.mxu0 0.0
        %340 = vmatpush1.msra.mxu0 0.0
        %341 = vmatprep.subr.mxu0 0.0
        %342 = vmatpush1.msra.mxu0 0.0
        %343 = vmatprep.subr.mxu0 0.0
        %344 = vmatpush1.msra.mxu0 0.0
        %345 = vmatprep.subr.mxu0 0.0
        %346 = vmatpush1.msra.mxu0 0.0
        %347 = vmatprep.subr.mxu0 0.0
        %348 = vmatpush1.msra.mxu0 0.0
        %349 = vmatprep.subr.mxu0 0.0
        %350 = vmatpush1.msra.mxu0 0.0
        %351 = vmatprep.subr.mxu0 0.0
        %352 = vmatpush1.msra.mxu0 0.0
        %353 = vmatprep.subr.mxu0 0.0
        %354 = vmatpush1.msra.mxu0 0.0
        %355 = vmatprep.subr.mxu0 0.0
        %356 = vmatpush1.msra.mxu0 0.0
        %357 = vmatprep.subr.mxu0 0.0
        %358 = vmatpush1.msra.mxu0 0.0
        %359 = vmatprep.subr.mxu0 0.0
        %360 = vmatpush1.msra.mxu0 0.0
        %361 = vmatprep.subr.mxu0 0.0
        %362 = vmatpush1.msra.mxu0 0.0
        %363 = vmatprep.subr.mxu0 0.0
        %364 = vmatpush1.msra.mxu0 0.0
        %365 = vmatprep.subr.mxu0 0.0
        %366 = vmatpush1.msra.mxu0 0.0
        %367 = vmatprep.subr.mxu0 0.0
        %368 = vmatpush1.msra.mxu0 0.0
        %369 = vmatprep.subr.mxu0 0.0
        %370 = vmatpush1.msra.mxu0 0.0
        %371 = vmatprep.subr.mxu0 0.0
        %372 = vmatpush1.msra.mxu0 0.0
        %373 = vmatprep.subr.mxu0 0.0
        %374 = vmatpush1.msra.mxu0 0.0
        %375 = vmatprep.subr.mxu0 0.0
        %376 = vmatpush1.msra.mxu0 0.0
        %377 = vmatprep.mubr.f32.mxu0 0.0
        %378 = vmatmul.mubr.f32.gmra.mrb[0].mxu0 %v262
        %v379 = vpop.f32.mrb[0].mxu0
        %v380 = vadd.f32 %v258, %v379
        %v381 = vpop.f32.mrb[0].mxu0
        %382 = vmatprep.mubr.f32.mxu0 0.0
        %383 = vmatmul.mubr.f32.gmra.mrb[0].mxu0 %v265
        %v384 = vpop.f32.mrb[0].mxu0
        %v385 = vadd.f32 %v258, %v384
        %v386 = vpop.f32.mrb[0].mxu0
        %387 = vmatprep.mubr.f32.mxu0 0.0
        %388 = vmatmul.mubr.f32.gmra.mrb[0].mxu0 %v268
        %v389 = vpop.f32.mrb[0].mxu0
        %v390 = vadd.f32 %v258, %v389
        %v391 = vpop.f32.mrb[0].mxu0
        %392 = vmatprep.mubr.f32.mxu0 0.0
        %393 = vmatmul.mubr.f32.gmra.mrb[0].mxu0 %v271
        %v394 = vpop.f32.mrb[0].mxu0
        %v395 = vadd.f32 %v258, %v394
        %v396 = vpop.f32.mrb[0].mxu0
        %397 = vmatprep.mubr.f32.mxu0 0.0
        %398 = vmatmul.mubr.f32.gmra.mrb[0].mxu0 %v274
        %v399 = vpop.f32.mrb[0].mxu0
        %v400 = vadd.f32 %v258, %v399
        %v401 = vpop.f32.mrb[0].mxu0
        %402 = vmatprep.mubr.f32.mxu0 0.0
        %403 = vmatmul.mubr.f32.gmra.mrb[0].mxu0 %v277
        %v404 = vpop.f32.mrb[0].mxu0
        %v405 = vadd.f32 %v258, %v404
        %v406 = vpop.f32.mrb[0].mxu0
        %407 = vmatprep.mubr.f32.mxu0 0.0
        %408 = vmatmul.mubr.f32.gmra.mrb[0].mxu0 %v280
        %v409 = vpop.f32.mrb[0].mxu0
        %v410 = vadd.f32 %v258, %v409
        %v411 = vpop.f32.mrb[0].mxu0
        %412 = vmatprep.mubr.f32.mxu0 0.0
        %413 = vmatmul.mubr.f32.gmra.mrb[0].mxu0 %v283
        %v414 = vpop.f32.mrb[0].mxu0
        %v415 = vadd.f32 %v258, %v414
        %v416 = vpop.f32.mrb[0].mxu0
        %417 = vmatprep.mubr.f32.mxu0 0.0
        %418 = vmatmul.mubr.f32.gmra.mrb[0].mxu0 %v286
        %v419 = vpop.f32.mrb[0].mxu0
        %v420 = vadd.f32 %v258, %v419
        %v421 = vpop.f32.mrb[0].mxu0
        %422 = vmatprep.mubr.f32.mxu0 0.0
        %423 = vmatmul.mubr.f32.gmra.mrb[0].mxu0 %v289
        %v424 = vpop.f32.mrb[0].mxu0
        %v425 = vadd.f32 %v258, %v424
        %v426 = vpop.f32.mrb[0].mxu0
        %427 = vmatprep.mubr.f32.mxu0 0.0
        %428 = vmatmul.mubr.f32.gmra.mrb[0].mxu0 %v292
        %v429 = vpop.f32.mrb[0].mxu0
        %v430 = vadd.f32 %v258, %v429
        %v431 = vpop.f32.mrb[0].mxu0
        %432 = vmatprep.mubr.f32.mxu0 0.0
        %433 = vmatmul.mubr.f32.gmra.mrb[0].mxu0 %v295
        %v434 = vpop.f32.mrb[0].mxu0
        %v435 = vadd.f32 %v258, %v434
        %v436 = vpop.f32.mrb[0].mxu0
        %437 = vmatprep.mubr.f32.mxu0 0.0
        %438 = vmatmul.mubr.f32.gmra.mrb[0].mxu0 %v298
        %v439 = vpop.f32.mrb[0].mxu0
        %v440 = vadd.f32 %v258, %v439
        %v441 = vpop.f32.mrb[0].mxu0
        %442 = vmatprep.mubr.f32.mxu0 0.0
        %443 = vmatmul.mubr.f32.gmra.mrb[0].mxu0 %v301
        %v444 = vpop.f32.mrb[0].mxu0
        %v445 = vadd.f32 %v258, %v444
        %v446 = vpop.f32.mrb[0].mxu0
        %447 = vmatprep.mubr.f32.mxu0 0.0
        %448 = vmatmul.mubr.f32.gmra.mrb[0].mxu0 %v304
        %v449 = vpop.f32.mrb[0].mxu0
        %v450 = vadd.f32 %v258, %v449
        %v451 = vpop.f32.mrb[0].mxu0
        %452 = vmatprep.mubr.f32.mxu0 0.0
        %453 = vmatmul.mubr.f32.gmra.mrb[0].mxu0 %v307
        %v454 = vpop.f32.mrb[0].mxu0
        %v455 = vadd.f32 %v258, %v454
        %v456 = vpop.f32.mrb[0].mxu0
        %457 = vdwg.mxu0
        %v458 = vmax.f32 %v380, 0.0
        %v459 = vmax.f32 %v385, 0.0
        %v460 = vmax.f32 %v390, 0.0
        %v461 = vmax.f32 %v395, 0.0
        %v462 = vmax.f32 %v400, 0.0
        %v463 = vmax.f32 %v405, 0.0
        %v464 = vmax.f32 %v410, 0.0
        %v465 = vmax.f32 %v415, 0.0
        %v466 = vmax.f32 %v420, 0.0
        %v467 = vmax.f32 %v425, 0.0
        %v468 = vmax.f32 %v430, 0.0
        %v469 = vmax.f32 %v435, 0.0
        %v470 = vmax.f32 %v440, 0.0
        %v471 = vmax.f32 %v445, 0.0
        %v472 = vmax.f32 %v450, 0.0
        %v473 = vmax.f32 %v455, 0.0
        %v474 = vld [vmem:[%s3] sm:$0xff]
        %475 = vmatprep.subr.mxu0 0.0
        %476 = vmatpush1.xpose.msra.mxu0 %v458
        %477 = vmatprep.subr.mxu0 0.0
        %478 = vmatpush1.xpose.msra.mxu0 %v459
        %479 = vmatprep.subr.mxu0 0.0
        %480 = vmatpush1.xpose.msra.mxu0 %v460
        %481 = vmatprep.subr.mxu0 0.0
        %482 = vmatpush1.xpose.msra.mxu0 %v461
        %483 = vmatprep.subr.mxu0 0.0
        %484 = vmatpush1.xpose.msra.mxu0 %v462
        %485 = vmatprep.subr.mxu0 0.0
        %486 = vmatpush1.xpose.msra.mxu0 %v463
        %487 = vmatprep.subr.mxu0 0.0
        %488 = vmatpush1.xpose.msra.mxu0 %v464
        %489 = vmatprep.subr.mxu0 0.0
        %490 = vmatpush1.xpose.msra.mxu0 %v465
        %491 = vmatprep.subr.mxu0 0.0
        %492 = vmatpush1.xpose.msra.mxu0 %v466
        %493 = vmatprep.subr.mxu0 0.0
        %494 = vmatpush1.xpose.msra.mxu0 %v467
        %495 = vmatprep.subr.mxu0 0.0
        %496 = vmatpush1.xpose.msra.mxu0 %v468
        %497 = vmatprep.subr.mxu0 0.0
        %498 = vmatpush1.xpose.msra.mxu0 %v469
        %499 = vmatprep.subr.mxu0 0.0
        %500 = vmatpush1.xpose.msra.mxu0 %v470
        %501 = vmatprep.subr.mxu0 0.0
        %502 = vmatpush1.xpose.msra.mxu0 %v471
        %503 = vmatprep.subr.mxu0 0.0
        %504 = vmatpush1.xpose.msra.mxu0 %v472
        %505 = vmatprep.subr.mxu0 0.0
        %506 = vmatpush1.xpose.msra.mxu0 %v473
        %507 = vmatprep.subr.mxu0 0.0
        %508 = vmatpush1.xpose.msra.mxu0 0.0
        %509 = vmatprep.subr.mxu0 0.0
        %510 = vmatpush1.xpose.msra.mxu0 0.0
        %511 = vmatprep.subr.mxu0 0.0
        %512 = vmatpush1.xpose.msra.mxu0 0.0
        %513 = vmatprep.subr.mxu0 0.0
        %514 = vmatpush1.xpose.msra.mxu0 0.0
        %515 = vmatprep.subr.mxu0 0.0
        %516 = vmatpush1.xpose.msra.mxu0 0.0
        %517 = vmatprep.subr.mxu0 0.0
        %518 = vmatpush1.xpose.msra.mxu0 0.0
        %519 = vmatprep.subr.mxu0 0.0
        %520 = vmatpush1.xpose.msra.mxu0 0.0
        %521 = vmatprep.subr.mxu0 0.0
        %522 = vmatpush1.xpose.msra.mxu0 0.0
        %523 = vmatprep.subr.mxu0 0.0
        %524 = vmatpush1.xpose.msra.mxu0 0.0
        %525 = vmatprep.subr.mxu0 0.0
        %526 = vmatpush1.xpose.msra.mxu0 0.0
        %527 = vmatprep.subr.mxu0 0.0
        %528 = vmatpush1.xpose.msra.mxu0 0.0
        %529 = vmatprep.subr.mxu0 0.0
        %530 = vmatpush1.xpose.msra.mxu0 0.0
        %531 = vmatprep.subr.mxu0 0.0
        %532 = vmatpush1.xpose.msra.mxu0 0.0
        %533 = vmatprep.subr.mxu0 0.0
        %534 = vmatpush1.xpose.msra.mxu0 0.0
        %535 = vmatprep.subr.mxu0 0.0
        %536 = vmatpush1.xpose.msra.mxu0 0.0
        %537 = vmatprep.subr.mxu0 0.0
        %538 = vmatpush1.xpose.msra.mxu0 0.0
        %539 = vmatprep.mubr.f32.mxu0 0.0
        %540 = vmatmul.mubr.f32.gmra.mrb[0].mxu0 %v474
        %v541 = vpop.f32.mrb[0].mxu0
        %v542 = vadd.f32 0.0, %v541
        %v543 = vpop.f32.mrb[0].mxu0
        %544 = vdwg.mxu0
        %s545 = sld [smem:[#allocation2]]
        %v546 = vstv %s545
        %v547 = vadd.f32 %v542, %v546
        %548 = vst [vmem:[%s218] sm:$0x1] %v547
        %s549 = sand.u32 %s138, 1
        %s550 = scalar_lea.sflag [#allocation4], %s549
        %s551 = sand.u32 %s138, 1
        %s552 = scalar_lea.vmem [#allocation3], %s551
        // Predicated region
        $region41: #{neural_net_forward.1} parent=39 // pred_check
          %p553 = pneg %p148
        $region42: #{neural_net_forward.1} parent=39 // pred_check_branch
          %555 = sbr.rel (%p553) target = $region44
        $region43: #{neural_net_forward.1} parent=39 // pred_region
          %s557 = ssub.s32 16, 16
          %558 = vsyncadd %s550, %s557
          %s559 = smul.addr %s20, 16
          %s560 = scalar_lea.hbm %s5, %s559
          %s562 = sshll.u32 %s552, 4
          %s563 = int_to_ptr.vmem [resolvable:$true] %s562
          %565 = dma.vmem_to_hbm [thread:$0]  %s563, 16, %s560, %s550
        $region44: #{neural_net_forward.1} parent=39 // pred_fallthru
          _
      $region40: #{neural_net_forward.1} parent=5 // pred_fallthru
        _
      %p566 = scmp.le.s32.totalorder 2, %s15
      // Predicated region
      $region45: #{neural_net_forward.1} parent=5 // pred_check
        %p567 = pneg %p566
      $region46: #{neural_net_forward.1} parent=5 // pred_check_branch
        %569 = sbr.rel (%p567) target = $region48
      $region47: #{neural_net_forward.1} parent=5 // pred_region
        %s570 = ssub.s32 %s15, 2
        // Predicated region
        $region49: #{neural_net_forward.1} parent=47 // pred_check
          %p571 = pneg %p154
        $region50: #{neural_net_forward.1} parent=47 // pred_check_branch
          %573 = sbr.rel (%p571) target = $region52
        $region51: #{neural_net_forward.1} parent=47 // pred_region
          %s574 = sand.u32 %s139, 1
          %s575 = scalar_lea.sflag [#allocation4], %s574
          %s576 = sand.u32 %s139, 1
          %s577 = scalar_lea.vmem [#allocation3], %s576
          %578 = dma.done %s575, 16
        $region52: #{neural_net_forward.1} parent=47 // pred_fallthru
          _
      $region48: #{neural_net_forward.1} parent=5 // pred_fallthru
        _
    $region6: #{neural_net_forward.1} parent=1 // loop_footer
      %s19 = sadd.s32 1, %s15
    $region7: #{neural_net_forward.1} parent=1 // loop_footer_branch
      %14 = sbr.rel target = $region3
    $region8: #{neural_net_forward.1} parent=1 // loop_exit
      _
    %579 = vsyncpa [#allocation4], 1
    %s580 = scalar_lea.sflag [#allocation4], 1
    %581 = vsyncpa %s580, 1

</llo_original>
